<compile_context>
chip_gen: v6e
topology: v6e:2x2x1
jax: 0.10.0
libtpu: 0.0.40
codegen_flags: <defaults>
</compile_context>

<pallas_src>
import jax
import jax.numpy as jnp
from jax.experimental import pallas as pl
from jax.experimental.pallas import tpu as pltpu

LN_EPS = 1e-5
SINGLE_K_MAX = 4096      # collapse the K reduction into one grid step up to this d_pad
TK_TARGET = 2048         # K tile target for the tiled path (multiple of 128)


def _round_up(n: int, m: int) -> int:
    return ((n + m - 1) // m) * m


def _pick_tk(d_pad: int, tk_target: int) -> int:
    """Largest multiple of 128 that divides d_pad and is <= tk_target (always >= 128)."""
    best, t = 128, 128
    limit = min(tk_target, d_pad)
    while t <= limit:
        if d_pad % t == 0:
            best = t
        t += 128
    return best


def _epilogue(h, hp_ref, w2_ref, b2_ref, o_ref):
    """fc1 bias + ReLU -> LayerNorm (true hidden width) -> fc2, f32 except the fc2 MXU feed."""
    hp = hp_ref[...]                         # (8, hidden) f32: rows 0=b1, 1=gamma, 2=beta
    h = jnp.maximum(h + hp[0:1, :], 0.0)     # fc1 bias + ReLU
    mean = jnp.mean(h, axis=-1, keepdims=True)
    hc = h - mean
    var = jnp.mean(hc * hc, axis=-1, keepdims=True)   # centered two-pass variance
    inv = jax.lax.rsqrt(var + LN_EPS)                 # EUP slot (free vs VALU)
    hn = hc * inv * hp[1:2, :] + hp[2:3, :]
    out = jnp.dot(hn.astype(w2_ref.dtype), w2_ref[...],
                  preferred_element_type=jnp.float32)
    o_ref[...] = (out + b2_ref[...]).astype(o_ref.dtype)


def mlp_kernel_single(x_ref, w1_ref, hp_ref, w2_ref, b2_ref, o_ref):
    """Grid = (batch_tiles,). Whole K reduction in one step: no scratch, no phases."""
    h = jnp.dot(x_ref[...].astype(w1_ref.dtype), w1_ref[...],
                preferred_element_type=jnp.float32)
    _epilogue(h, hp_ref, w2_ref, b2_ref, o_ref)


def mlp_kernel_ktiled(x_ref, w1_ref, hp_ref, w2_ref, b2_ref, o_ref, acc_ref):
    """Grid = (batch_tiles, k_tiles); K (input_dim reduction) is the last axis."""
    k = pl.program_id(1)

    @pl.when(k == 0)
    def _():
        acc_ref[...] = jnp.zeros_like(acc_ref)

    acc_ref[...] += jnp.dot(x_ref[...].astype(w1_ref.dtype), w1_ref[...],
                            preferred_element_type=jnp.float32)

    @pl.when(k == pl.num_programs(1) - 1)
    def _():
        _epilogue(acc_ref[...], hp_ref, w2_ref, b2_ref, o_ref)


def prepare_params(params, input_dim):
    """One-time weight prep (padding + bf16 cast), hoisted out of the per-call forward."""
    w1, b1, gamma, beta, w2, b2 = params        # w1:(D,Hd) w2:(Hd,C); biases/affine (1,*)
    hidden = w1.shape[1]
    num_classes = w2.shape[1]
    d_pad = _round_up(input_dim, 128)
    CP = _round_up(num_classes, 128)            # lane-dense logits -> unmasked stores
    bf16 = jnp.bfloat16

    w1_p = jnp.zeros((d_pad, hidden), bf16).at[:input_dim, :].set(w1.astype(bf16))
    hp = jnp.zeros((8, hidden), jnp.float32)
    hp = hp.at[0, :].set(b1.reshape(-1))
    hp = hp.at[1, :].set(gamma.reshape(-1))
    hp = hp.at[2, :].set(beta.reshape(-1))
    w2_p = jnp.zeros((hidden, CP), bf16).at[:, :num_classes].set(w2.astype(bf16))
    b2_p = jnp.zeros((1, CP), jnp.float32).at[:, :num_classes].set(b2.reshape(1, -1))
    return dict(w1=w1_p, hp=hp, w2=w2_p, b2=b2_p,
                hidden=hidden, num_classes=num_classes,
                d=input_dim, d_pad=d_pad, CP=CP)


def mlp_classifier_forward(x_nchw, prepped):
    """x_nchw: (b, 3, H, W) float32. Returns (b, num_classes) float32 logits."""
    b = x_nchw.shape[0]
    x_flat = x_nchw.reshape(b, -1)              # nn.Flatten on NCHW, row-major
    d = prepped["d"]
    assert x_flat.shape[1] == d
    d_pad, CP = prepped["d_pad"], prepped["CP"]
    hidden, num_classes = prepped["hidden"], prepped["num_classes"]

    # ---- batch tiling: sublane multiple 8 (x streamed as f32); tb=256 for big batches --
    b_pad = _round_up(b, 8)
    if b_pad <= 256:
        tb, nb = b_pad, 1
    else:
        tb = 256                                # matches 256-wide MXU on v6e/v7x; halves
        b_pad = _round_up(b_pad, tb)            # the number of w1 re-streams vs tb=128
        nb = b_pad // tb

    # ---- minimal per-call x padding (no bf16 copy; cast happens in-kernel) -------------
    if b_pad != b or d_pad != d:
        x_p = jnp.zeros((b_pad, d_pad), x_flat.dtype).at[:b, :d].set(x_flat)
    else:
        x_p = x_flat

    w1_p, hp, w2_p, b2_p = prepped["w1"], prepped["hp"], prepped["w2"], prepped["b2"]

    flops = 2 * b_pad * d_pad * hidden + 2 * b_pad * hidden * CP
    bytes_accessed = (b_pad * d_pad * 4              # x (f32 stream)
                      + nb * d_pad * hidden * 2      # w1 re-streamed once per batch tile
                      + 8 * hidden * 4 + hidden * CP * 2 + CP * 4
                      + b_pad * CP * 4)              # output
    cost = pl.CostEstimate(flops=flops, transcendentals=b_pad,
                           bytes_accessed=bytes_accessed)

    # TODO(synk): if w1 is ever made fully VMEM-resident for large D, re-derive the budget
    # against v7x's 64 MiB physical / 32 MiB default scoped VMEM and pass
    # pltpu.CompilerParams(vmem_limit_bytes=...); the streamed tiles here are far below it.

    if d_pad <= SINGLE_K_MAX:
        out = pl.pallas_call(
            mlp_kernel_single,
            out_shape=jax.ShapeDtypeStruct((b_pad, CP), jnp.float32),
            grid_spec=pltpu.PrefetchScalarGridSpec(
                num_scalar_prefetch=0,
                grid=(nb,),
                in_specs=[
                    pl.BlockSpec((tb, d_pad), lambda i: (i, 0)),       # x (f32)
                    pl.BlockSpec((d_pad, hidden), lambda i: (0, 0)),   # w1 (bf16, hidden un-padded)
                    pl.BlockSpec((8, hidden), lambda i: (0, 0)),       # b1/gamma/beta fused
                    pl.BlockSpec((hidden, CP), lambda i: (0, 0)),      # w2 (bf16)
                    pl.BlockSpec((1, CP), lambda i: (0, 0)),           # b2
                ],
                out_specs=pl.BlockSpec((tb, CP), lambda i: (i, 0)),
            ),
            compiler_params=pltpu.CompilerParams(
                dimension_semantics=("parallel",)),                    # v7x megacore on batch
            cost_estimate=cost,
        )(x_p, w1_p, hp, w2_p, b2_p)
    else:
        tk = _pick_tk(d_pad, TK_TARGET)
        nk = d_pad // tk
        out = pl.pallas_call(
            mlp_kernel_ktiled,
            out_shape=jax.ShapeDtypeStruct((b_pad, CP), jnp.float32),
            grid_spec=pltpu.PrefetchScalarGridSpec(
                num_scalar_prefetch=0,
                grid=(nb, nk),                                         # K reduction last
                in_specs=[
                    pl.BlockSpec((tb, tk), lambda i, k: (i, k)),       # x (f32)
                    pl.BlockSpec((tk, hidden), lambda i, k: (k, 0)),   # w1 streamed over K
                    pl.BlockSpec((8, hidden), lambda i, k: (0, 0)),    # b1/gamma/beta fused
                    pl.BlockSpec((hidden, CP), lambda i, k: (0, 0)),   # w2
                    pl.BlockSpec((1, CP), lambda i, k: (0, 0)),        # b2
                ],
                out_specs=pl.BlockSpec((tb, CP), lambda i, k: (i, 0)),
                scratch_shapes=[pltpu.VMEM((tb, hidden), jnp.float32)],  # fc1 accumulator
            ),
            compiler_params=pltpu.CompilerParams(
                dimension_semantics=("parallel", "arbitrary")),
            cost_estimate=cost,
        )(x_p, w1_p, hp, w2_p, b2_p)

    return out[:b, :num_classes]


def init_params(key, input_dim, hidden_dim, num_classes):
    """Deterministic synthetic init (torch.nn.Linear-style uniform bounds)."""
    k1, k2, k3, k4 = jax.random.split(key, 4)
    bound1 = 1.0 / jnp.sqrt(input_dim)
    w1 = jax.random.uniform(k1, (input_dim, hidden_dim), jnp.float32, -bound1, bound1)
    b1 = jax.random.uniform(k2, (1, hidden_dim), jnp.float32, -bound1, bound1)
    gamma = jnp.ones((1, hidden_dim), jnp.float32)   # LayerNorm weight
    beta = jnp.zeros((1, hidden_dim), jnp.float32)   # LayerNorm bias
    bound2 = 1.0 / jnp.sqrt(hidden_dim)
    w2 = jax.random.uniform(k3, (hidden_dim, num_classes), jnp.float32, -bound2, bound2)
    b2 = jax.random.uniform(k4, (1, num_classes), jnp.float32, -bound2, bound2)
    return (w1, b1, gamma, beta, w2, b2)


if __name__ == "__main__":
    # Small shapes consistent with the module's forward: (b, 3, H, W)
    B, C, H, W = 2, 3, 16, 16
    HIDDEN, NUM_CLASSES = 16, 6
    INPUT_DIM = C * H * W

    key = jax.random.PRNGKey(0)
    kx, kp = jax.random.split(key)
    x = jax.random.normal(kx, (B, C, H, W), jnp.float32)
    params = init_params(kp, INPUT_DIM, HIDDEN, NUM_CLASSES)

    prepped = prepare_params(params, INPUT_DIM)      # one-time weight prep (hoisted)
    logits = mlp_classifier_forward(x, prepped)
    jax.block_until_ready(logits)
    assert logits.shape == (B, NUM_CLASSES)

    w1, b1, gamma, beta, w2, b2 = params
    xf = x.reshape(B, -1)
    bf16 = jnp.bfloat16

    # Reference 1: same math as the kernel (bf16 operands, f32 accumulation) -> tight check.
    h_bf = jnp.dot(xf.astype(bf16), w1.astype(bf16), preferred_element_type=jnp.float32) + b1
    h_bf = jnp.maximum(h_bf, 0.0)
    mu = h_bf.mean(-1, keepdims=True)
    var = ((h_bf - mu) ** 2).mean(-1, keepdims=True)
    hn = (h_bf - mu) * jax.lax.rsqrt(var + LN_EPS) * gamma + beta
    ref_bf16 = jnp.dot(hn.astype(bf16), w2.astype(bf16), preferred_element_type=jnp.float32) + b2
    assert jnp.allclose(logits, ref_bf16, atol=2e-3, rtol=2e-3)

    # Reference 2: pure-f32 module semantics -> looser check (bf16 weight streaming).
    h = jnp.maximum(xf @ w1 + b1, 0.0)
    mu = h.mean(-1, keepdims=True)
    var = ((h - mu) ** 2).mean(-1, keepdims=True)
    hn = (h - mu) * jax.lax.rsqrt(var + LN_EPS) * gamma + beta
    ref_f32 = hn @ w2 + b2
    assert jnp.allclose(logits, ref_f32, atol=8e-2, rtol=8e-2)

    print("KERNEL_OK")
</pallas_src>

<mosaic_0001>
module attributes {stable_mosaic.version = 11 : i64} {
  func.func @mlp_kernel_single(%arg0: i32, %arg1: memref<8x768xf32, #tpu.memory_space<vmem>>, %arg2: memref<768x16xbf16, #tpu.memory_space<vmem>>, %arg3: memref<8x16xf32, #tpu.memory_space<vmem>>, %arg4: memref<16x128xbf16, #tpu.memory_space<vmem>>, %arg5: memref<1x128xf32, #tpu.memory_space<vmem>>, %arg6: memref<8x128xf32, #tpu.memory_space<vmem>>) attributes {dimension_semantics = [#tpu.dimension_semantics<parallel>], iteration_bounds = array<i64: 1>, scalar_prefetch = 0 : i64, scratch_operands = 0 : i64, tpu.core_type = #tpu.core_type<tc>, window_params = [{transform_indices = @transform_0, window_bounds = array<i64: 8, 768>}, {pipeline_mode = #tpu.pipeline_mode<synchronous>, transform_indices = @transform_1, window_bounds = array<i64: 768, 16>}, {pipeline_mode = #tpu.pipeline_mode<synchronous>, transform_indices = @transform_2, window_bounds = array<i64: 8, 16>}, {pipeline_mode = #tpu.pipeline_mode<synchronous>, transform_indices = @transform_3, window_bounds = array<i64: 16, 128>}, {pipeline_mode = #tpu.pipeline_mode<synchronous>, transform_indices = @transform_4, window_bounds = array<i64: 1, 128>}, {transform_indices = @transform_5, window_bounds = array<i64: 8, 128>}]} {
    %c0 = arith.constant 0 : index
    %c0_0 = arith.constant 0 : index
    %0 = vector.load %arg1[%c0, %c0_0] : memref<8x768xf32, #tpu.memory_space<vmem>>, vector<8x768xf32>
    %1 = arith.truncf %0 : vector<8x768xf32> to vector<8x768xbf16>
    %c0_1 = arith.constant 0 : index
    %c0_2 = arith.constant 0 : index
    %2 = vector.load %arg2[%c0_1, %c0_2] : memref<768x16xbf16, #tpu.memory_space<vmem>>, vector<768x16xbf16>
    %cst = arith.constant dense<0.000000e+00> : vector<8x16xf32>
    %3 = tpu.matmul %1, %2, %cst {dimension_numbers = #tpu.dot_dimension_numbers<[1], [0], [0], [1], [0, 0, 1, 1], [], []>} : vector<8x768xbf16>, vector<768x16xbf16>, vector<8x16xf32> -> vector<8x16xf32>
    %c0_3 = arith.constant 0 : index
    %c0_4 = arith.constant 0 : index
    %4 = vector.load %arg3[%c0_3, %c0_4] : memref<8x16xf32, #tpu.memory_space<vmem>>, vector<8x16xf32>
    %5 = vector.extract_strided_slice %4 {offsets = [0, 0], sizes = [1, 16], strides = [1, 1]} : vector<8x16xf32> to vector<1x16xf32>
    %6 = vector.broadcast %5 : vector<1x16xf32> to vector<8x16xf32>
    %7 = arith.addf %3, %6 : vector<8x16xf32>
    %cst_5 = arith.constant 0.000000e+00 : f32
    %8 = vector.broadcast %cst_5 : f32 to vector<8x16xf32>
    %9 = arith.maximumf %7, %8 : vector<8x16xf32>
    %cst_6 = arith.constant dense<0.000000e+00> : vector<8xf32>
    %10 = vector.multi_reduction <add>, %9, %cst_6 [1] : vector<8x16xf32> to vector<8xf32>
    %11 = vector.shape_cast %10 : vector<8xf32> to vector<8x1xf32>
    %cst_7 = arith.constant 1.600000e+01 : f32
    %12 = vector.broadcast %cst_7 : f32 to vector<8x1xf32>
    %13 = arith.divf %11, %12 : vector<8x1xf32>
    %14 = vector.broadcast %13 : vector<8x1xf32> to vector<8x16xf32>
    %15 = arith.subf %9, %14 : vector<8x16xf32>
    %16 = arith.mulf %15, %15 : vector<8x16xf32>
    %cst_8 = arith.constant dense<0.000000e+00> : vector<8xf32>
    %17 = vector.multi_reduction <add>, %16, %cst_8 [1] : vector<8x16xf32> to vector<8xf32>
    %18 = vector.shape_cast %17 : vector<8xf32> to vector<8x1xf32>
    %cst_9 = arith.constant 1.600000e+01 : f32
    %19 = vector.broadcast %cst_9 : f32 to vector<8x1xf32>
    %20 = arith.divf %18, %19 : vector<8x1xf32>
    %cst_10 = arith.constant 9.99999974E-6 : f32
    %21 = vector.broadcast %cst_10 : f32 to vector<8x1xf32>
    %22 = arith.addf %20, %21 : vector<8x1xf32>
    %23 = math.rsqrt %22 : vector<8x1xf32>
    %24 = vector.broadcast %23 : vector<8x1xf32> to vector<8x16xf32>
    %25 = arith.mulf %15, %24 : vector<8x16xf32>
    %26 = vector.extract_strided_slice %4 {offsets = [1, 0], sizes = [1, 16], strides = [1, 1]} : vector<8x16xf32> to vector<1x16xf32>
    %27 = vector.broadcast %26 : vector<1x16xf32> to vector<8x16xf32>
    %28 = arith.mulf %25, %27 : vector<8x16xf32>
    %29 = vector.extract_strided_slice %4 {offsets = [2, 0], sizes = [1, 16], strides = [1, 1]} : vector<8x16xf32> to vector<1x16xf32>
    %30 = vector.broadcast %29 : vector<1x16xf32> to vector<8x16xf32>
    %31 = arith.addf %28, %30 : vector<8x16xf32>
    %32 = arith.truncf %31 : vector<8x16xf32> to vector<8x16xbf16>
    %c0_11 = arith.constant 0 : index
    %c0_12 = arith.constant 0 : index
    %33 = vector.load %arg4[%c0_11, %c0_12] : memref<16x128xbf16, #tpu.memory_space<vmem>>, vector<16x128xbf16>
    %cst_13 = arith.constant dense<0.000000e+00> : vector<8x128xf32>
    %34 = tpu.matmul %32, %33, %cst_13 {dimension_numbers = #tpu.dot_dimension_numbers<[1], [0], [0], [1], [0, 0, 1, 1], [], []>} : vector<8x16xbf16>, vector<16x128xbf16>, vector<8x128xf32> -> vector<8x128xf32>
    %c0_14 = arith.constant 0 : index
    %c0_15 = arith.constant 0 : index
    %35 = vector.load %arg5[%c0_14, %c0_15] : memref<1x128xf32, #tpu.memory_space<vmem>>, vector<1x128xf32>
    %36 = vector.broadcast %35 : vector<1x128xf32> to vector<8x128xf32>
    %37 = arith.addf %34, %36 : vector<8x128xf32>
    %c0_16 = arith.constant 0 : index
    %c0_17 = arith.constant 0 : index
    %38 = vector.load %arg6[%c0_16, %c0_17] : memref<8x128xf32, #tpu.memory_space<vmem>>, vector<8x128xf32>
    tpu.vector_store %arg6[%c0_16, %c0_17], %37 {strides = array<i32>} : memref<8x128xf32, #tpu.memory_space<vmem>>, vector<8x128xf32>,
    return
  }
  func.func @transform_0(%arg0: i32) -> (i32, i32) {
    %c0_i32 = arith.constant 0 : i32
    %c0_i32_0 = arith.constant 0 : i32
    return %arg0, %c0_i32 : i32, i32
  }
  func.func @transform_1(%arg0: i32) -> (i32, i32) {
    %c0_i32 = arith.constant 0 : i32
    %c0_i32_0 = arith.constant 0 : i32
    %c0_i32_1 = arith.constant 0 : i32
    return %c0_i32, %c0_i32_0 : i32, i32
  }
  func.func @transform_2(%arg0: i32) -> (i32, i32) {
    %c0_i32 = arith.constant 0 : i32
    %c0_i32_0 = arith.constant 0 : i32
    %c0_i32_1 = arith.constant 0 : i32
    return %c0_i32, %c0_i32_0 : i32, i32
  }
  func.func @transform_3(%arg0: i32) -> (i32, i32) {
    %c0_i32 = arith.constant 0 : i32
    %c0_i32_0 = arith.constant 0 : i32
    %c0_i32_1 = arith.constant 0 : i32
    return %c0_i32, %c0_i32_0 : i32, i32
  }
  func.func @transform_4(%arg0: i32) -> (i32, i32) {
    %c0_i32 = arith.constant 0 : i32
    %c0_i32_0 = arith.constant 0 : i32
    %c0_i32_1 = arith.constant 0 : i32
    return %c0_i32, %c0_i32_0 : i32, i32
  }
  func.func @transform_5(%arg0: i32) -> (i32, i32) {
    %c0_i32 = arith.constant 0 : i32
    %c0_i32_0 = arith.constant 0 : i32
    return %arg0, %c0_i32 : i32, i32
  }
}

</mosaic_0001>

<llo_original>
// kernel: tpu_custom_call.1
$region0: #{tpu_custom_call.1}
  #allocation0 [shape = 'u32[]', space=smem, size = 0x4, offset = 0x4, fixed_abs, tag = 'smem constant byte address 0x4 - core index']
  #allocation1 [shape = 'u32[144,128]{1,0:T(1,128)}', space=vmem, size = 0x12000, scoped, tag = 'internal scratch']
  %s0 = inlined_call_operand.vmem [shape: f32[8,768], index: 0, kind: input, shape index: {}]
  %s1 = inlined_call_operand.vmem [shape: bf16[768,16], index: 1, kind: input, shape index: {}]
  %s2 = inlined_call_operand.vmem [shape: f32[8,16], index: 2, kind: input, shape index: {}]
  %s3 = inlined_call_operand.vmem [shape: bf16[16,128], index: 3, kind: input, shape index: {}]
  %s4 = inlined_call_operand.vmem [shape: f32[1,128], index: 4, kind: input, shape index: {}]
  %s5 = inlined_call_operand.hbm [shape: f32[8,128], index: 5, kind: output, shape index: {}]
  %s6 = sld [smem:[#allocation0]]
  $region30: #{tpu_custom_call.1} parent=0
    _
  %s8 = ssub.s32 1, %s6
  %s9 = scalar_select 0, %s8, %s6
  $region1: #{tpu_custom_call.1} parent=0
    #allocation2 [shape = 'u8[4096]{0}', space=vmem, size = 0x1000, scoped, tag = 'output window, operand 0, single buffered']
    #allocation3 [shape = 's32[1]{0}', space=sflag, size = 0x4, scoped, tag = 'scoped memory for tpu_custom_call.1']
    %10 = vsyncpa [#allocation3], 0
    // Predicated region
    $region2: #{tpu_custom_call.1} parent=1 // pred_check
      _
    $region3: #{tpu_custom_call.1} parent=1 // pred_check_branch
      %12 = sbr.rel (0) target = $region5
    $region4: #{tpu_custom_call.1} parent=1 // pred_region
      _
    $region5: #{tpu_custom_call.1} parent=1 // pred_fallthru
      _
    // Predicated region
    $region6: #{tpu_custom_call.1} parent=1 // pred_check
      _
    $region7: #{tpu_custom_call.1} parent=1 // pred_check_branch
      %14 = sbr.rel (0) target = $region9
    $region8: #{tpu_custom_call.1} parent=1 // pred_region
      _
    $region9: #{tpu_custom_call.1} parent=1 // pred_fallthru
      _
    // Predicated region
    $region10: #{tpu_custom_call.1} parent=1 // pred_check
      _
    $region11: #{tpu_custom_call.1} parent=1 // pred_check_branch
      %16 = sbr.rel (0) target = $region13
    $region12: #{tpu_custom_call.1} parent=1 // pred_region
      _
    $region13: #{tpu_custom_call.1} parent=1 // pred_fallthru
      _
    // Predicated region
    $region14: #{tpu_custom_call.1} parent=1 // pred_check
      _
    $region15: #{tpu_custom_call.1} parent=1 // pred_check_branch
      %18 = sbr.rel (0) target = $region17
    $region16: #{tpu_custom_call.1} parent=1 // pred_region
      _
    $region17: #{tpu_custom_call.1} parent=1 // pred_fallthru
      _
    // Predicated region
    $region18: #{tpu_custom_call.1} parent=1 // pred_check
      _
    $region19: #{tpu_custom_call.1} parent=1 // pred_check_branch
      %20 = sbr.rel (0) target = $region21
    $region20: #{tpu_custom_call.1} parent=1 // pred_region
      _
    $region21: #{tpu_custom_call.1} parent=1 // pred_fallthru
      _
    %v22 = vld [vmem:[%s0] sm:$0xff]
    %v23 = vld [vmem:[%s0 + $0x8] sm:$0xff]
    %v24 = vld [vmem:[%s0 + $0x10] sm:$0xff]
    %v25 = vld [vmem:[%s0 + $0x18] sm:$0xff]
    %v26 = vld [vmem:[%s0 + $0x20] sm:$0xff]
    %v27 = vld [vmem:[%s0 + $0x28] sm:$0xff]
    %v28 = vpack.c.bf16 %v22, %v22
    %v29 = vpack.c.bf16 %v23, %v23
    %v30 = vpack.c.bf16 %v24, %v24
    %v31 = vpack.c.bf16 %v25, %v25
    %v32 = vpack.c.bf16 %v26, %v26
    %v33 = vpack.c.bf16 %v27, %v27
    %v34 = vld [vmem:[%s1] sm:$0xf]
    %v35 = vld [vmem:[%s1 + $0x4] sm:$0xf]
    %v36 = vld [vmem:[%s1 + $0x8] sm:$0xf]
    %v37 = vld [vmem:[%s1 + $0xc] sm:$0xf]
    %v38 = vld [vmem:[%s1 + $0x10] sm:$0xf]
    %v39 = vld [vmem:[%s1 + $0x14] sm:$0xf]
    %v40 = vld [vmem:[%s1 + $0x18] sm:$0xf]
    %v41 = vld [vmem:[%s1 + $0x1c] sm:$0xf]
    %v42 = vld [vmem:[%s1 + $0x20] sm:$0xf]
    %v43 = vld [vmem:[%s1 + $0x24] sm:$0xf]
    %v44 = vld [vmem:[%s1 + $0x28] sm:$0xf]
    %v45 = vld [vmem:[%s1 + $0x2c] sm:$0xf]
    %v46 = vld [vmem:[%s1 + $0x30] sm:$0xf]
    %v47 = vld [vmem:[%s1 + $0x34] sm:$0xf]
    %v48 = vld [vmem:[%s1 + $0x38] sm:$0xf]
    %v49 = vld [vmem:[%s1 + $0x3c] sm:$0xf]
    %v50 = vld [vmem:[%s1 + $0x40] sm:$0xf]
    %v51 = vld [vmem:[%s1 + $0x44] sm:$0xf]
    %v52 = vld [vmem:[%s1 + $0x48] sm:$0xf]
    %v53 = vld [vmem:[%s1 + $0x4c] sm:$0xf]
    %v54 = vld [vmem:[%s1 + $0x50] sm:$0xf]
    %v55 = vld [vmem:[%s1 + $0x54] sm:$0xf]
    %v56 = vld [vmem:[%s1 + $0x58] sm:$0xf]
    %v57 = vld [vmem:[%s1 + $0x5c] sm:$0xf]
    %v58 = vld [vmem:[%s1 + $0x60] sm:$0xf]
    %v59 = vld [vmem:[%s1 + $0x64] sm:$0xf]
    %v60 = vld [vmem:[%s1 + $0x68] sm:$0xf]
    %v61 = vld [vmem:[%s1 + $0x6c] sm:$0xf]
    %v62 = vld [vmem:[%s1 + $0x70] sm:$0xf]
    %v63 = vld [vmem:[%s1 + $0x74] sm:$0xf]
    %v64 = vld [vmem:[%s1 + $0x78] sm:$0xf]
    %v65 = vld [vmem:[%s1 + $0x7c] sm:$0xf]
    %v66 = vld [vmem:[%s1 + $0x80] sm:$0xf]
    %v67 = vld [vmem:[%s1 + $0x84] sm:$0xf]
    %v68 = vld [vmem:[%s1 + $0x88] sm:$0xf]
    %v69 = vld [vmem:[%s1 + $0x8c] sm:$0xf]
    %v70 = vld [vmem:[%s1 + $0x90] sm:$0xf]
    %v71 = vld [vmem:[%s1 + $0x94] sm:$0xf]
    %v72 = vld [vmem:[%s1 + $0x98] sm:$0xf]
    %v73 = vld [vmem:[%s1 + $0x9c] sm:$0xf]
    %v74 = vld [vmem:[%s1 + $0xa0] sm:$0xf]
    %v75 = vld [vmem:[%s1 + $0xa4] sm:$0xf]
    %v76 = vld [vmem:[%s1 + $0xa8] sm:$0xf]
    %v77 = vld [vmem:[%s1 + $0xac] sm:$0xf]
    %v78 = vld [vmem:[%s1 + $0xb0] sm:$0xf]
    %v79 = vld [vmem:[%s1 + $0xb4] sm:$0xf]
    %v80 = vld [vmem:[%s1 + $0xb8] sm:$0xf]
    %v81 = vld [vmem:[%s1 + $0xbc] sm:$0xf]
    %v82 = vld [vmem:[%s1 + $0xc0] sm:$0xf]
    %v83 = vld [vmem:[%s1 + $0xc4] sm:$0xf]
    %v84 = vld [vmem:[%s1 + $0xc8] sm:$0xf]
    %v85 = vld [vmem:[%s1 + $0xcc] sm:$0xf]
    %v86 = vld [vmem:[%s1 + $0xd0] sm:$0xf]
    %v87 = vld [vmem:[%s1 + $0xd4] sm:$0xf]
    %v88 = vld [vmem:[%s1 + $0xd8] sm:$0xf]
    %v89 = vld [vmem:[%s1 + $0xdc] sm:$0xf]
    %v90 = vld [vmem:[%s1 + $0xe0] sm:$0xf]
    %v91 = vld [vmem:[%s1 + $0xe4] sm:$0xf]
    %v92 = vld [vmem:[%s1 + $0xe8] sm:$0xf]
    %v93 = vld [vmem:[%s1 + $0xec] sm:$0xf]
    %v94 = vld [vmem:[%s1 + $0xf0] sm:$0xf]
    %v95 = vld [vmem:[%s1 + $0xf4] sm:$0xf]
    %v96 = vld [vmem:[%s1 + $0xf8] sm:$0xf]
    %v97 = vld [vmem:[%s1 + $0xfc] sm:$0xf]
    %v98 = vld [vmem:[%s1 + $0x100] sm:$0xf]
    %v99 = vld [vmem:[%s1 + $0x104] sm:$0xf]
    %v100 = vld [vmem:[%s1 + $0x108] sm:$0xf]
    %v101 = vld [vmem:[%s1 + $0x10c] sm:$0xf]
    %v102 = vld [vmem:[%s1 + $0x110] sm:$0xf]
    %v103 = vld [vmem:[%s1 + $0x114] sm:$0xf]
    %v104 = vld [vmem:[%s1 + $0x118] sm:$0xf]
    %v105 = vld [vmem:[%s1 + $0x11c] sm:$0xf]
    %v106 = vld [vmem:[%s1 + $0x120] sm:$0xf]
    %v107 = vld [vmem:[%s1 + $0x124] sm:$0xf]
    %v108 = vld [vmem:[%s1 + $0x128] sm:$0xf]
    %v109 = vld [vmem:[%s1 + $0x12c] sm:$0xf]
    %v110 = vld [vmem:[%s1 + $0x130] sm:$0xf]
    %v111 = vld [vmem:[%s1 + $0x134] sm:$0xf]
    %v112 = vld [vmem:[%s1 + $0x138] sm:$0xf]
    %v113 = vld [vmem:[%s1 + $0x13c] sm:$0xf]
    %v114 = vld [vmem:[%s1 + $0x140] sm:$0xf]
    %v115 = vld [vmem:[%s1 + $0x144] sm:$0xf]
    %v116 = vld [vmem:[%s1 + $0x148] sm:$0xf]
    %v117 = vld [vmem:[%s1 + $0x14c] sm:$0xf]
    %v118 = vld [vmem:[%s1 + $0x150] sm:$0xf]
    %v119 = vld [vmem:[%s1 + $0x154] sm:$0xf]
    %v120 = vld [vmem:[%s1 + $0x158] sm:$0xf]
    %v121 = vld [vmem:[%s1 + $0x15c] sm:$0xf]
    %v122 = vld [vmem:[%s1 + $0x160] sm:$0xf]
    %v123 = vld [vmem:[%s1 + $0x164] sm:$0xf]
    %v124 = vld [vmem:[%s1 + $0x168] sm:$0xf]
    %v125 = vld [vmem:[%s1 + $0x16c] sm:$0xf]
    %v126 = vld [vmem:[%s1 + $0x170] sm:$0xf]
    %v127 = vld [vmem:[%s1 + $0x174] sm:$0xf]
    %v128 = vld [vmem:[%s1 + $0x178] sm:$0xf]
    %v129 = vld [vmem:[%s1 + $0x17c] sm:$0xf]
    %v130 = vld [vmem:[%s2] sm:$0xff]
    %v131 = vlaneseq
    %v132 = vshrl.u32 %v131, 7
    %v133 = vsub.s32 0, %v132
    %v134 = vrot.slane %v130, %v133
    %v231 = vunpack.c.l.b16 %v34
    %v232 = vunpack.c.l.b16 %v35
    %v233 = vunpack.c.l.b16 %v36
    %v234 = vunpack.c.l.b16 %v37
    %v235 = vunpack.c.l.b16 %v38
    %v236 = vunpack.c.l.b16 %v39
    %v237 = vunpack.c.l.b16 %v40
    %v238 = vunpack.c.l.b16 %v41
    %v239 = vunpack.c.l.b16 %v42
    %v240 = vunpack.c.l.b16 %v43
    %v241 = vunpack.c.l.b16 %v44
    %v242 = vunpack.c.l.b16 %v45
    %v243 = vunpack.c.l.b16 %v46
    %v244 = vunpack.c.l.b16 %v47
    %v245 = vunpack.c.l.b16 %v48
    %v246 = vunpack.c.l.b16 %v49
    %v247 = vunpack.c.l.b16 %v50
    %v248 = vunpack.c.l.b16 %v51
    %v249 = vunpack.c.l.b16 %v52
    %v250 = vunpack.c.l.b16 %v53
    %v251 = vunpack.c.l.b16 %v54
    %v252 = vunpack.c.l.b16 %v55
    %v253 = vunpack.c.l.b16 %v56
    %v254 = vunpack.c.l.b16 %v57
    %v255 = vunpack.c.l.b16 %v58
    %v256 = vunpack.c.l.b16 %v59
    %v257 = vunpack.c.l.b16 %v60
    %v258 = vunpack.c.l.b16 %v61
    %v259 = vunpack.c.l.b16 %v62
    %v260 = vunpack.c.l.b16 %v63
    %v261 = vunpack.c.l.b16 %v64
    %v262 = vunpack.c.l.b16 %v65
    %v263 = vunpack.c.l.b16 %v66
    %v264 = vunpack.c.l.b16 %v67
    %v265 = vunpack.c.l.b16 %v68
    %v266 = vunpack.c.l.b16 %v69
    %v267 = vunpack.c.l.b16 %v70
    %v268 = vunpack.c.l.b16 %v71
    %v269 = vunpack.c.l.b16 %v72
    %v270 = vunpack.c.l.b16 %v73
    %v271 = vunpack.c.l.b16 %v74
    %v272 = vunpack.c.l.b16 %v75
    %v273 = vunpack.c.l.b16 %v76
    %v274 = vunpack.c.l.b16 %v77
    %v275 = vunpack.c.l.b16 %v78
    %v276 = vunpack.c.l.b16 %v79
    %v277 = vunpack.c.l.b16 %v80
    %v278 = vunpack.c.l.b16 %v81
    %v279 = vunpack.c.l.b16 %v82
    %v280 = vunpack.c.l.b16 %v83
    %v281 = vunpack.c.l.b16 %v84
    %v282 = vunpack.c.l.b16 %v85
    %v283 = vunpack.c.l.b16 %v86
    %v284 = vunpack.c.l.b16 %v87
    %v285 = vunpack.c.l.b16 %v88
    %v286 = vunpack.c.l.b16 %v89
    %v287 = vunpack.c.l.b16 %v90
    %v288 = vunpack.c.l.b16 %v91
    %v289 = vunpack.c.l.b16 %v92
    %v290 = vunpack.c.l.b16 %v93
    %v291 = vunpack.c.l.b16 %v94
    %v292 = vunpack.c.l.b16 %v95
    %v293 = vunpack.c.l.b16 %v96
    %v294 = vunpack.c.l.b16 %v97
    %v295 = vunpack.c.l.b16 %v98
    %v296 = vunpack.c.l.b16 %v99
    %v297 = vunpack.c.l.b16 %v100
    %v298 = vunpack.c.l.b16 %v101
    %v299 = vunpack.c.l.b16 %v102
    %v300 = vunpack.c.l.b16 %v103
    %v301 = vunpack.c.l.b16 %v104
    %v302 = vunpack.c.l.b16 %v105
    %v303 = vunpack.c.l.b16 %v106
    %v304 = vunpack.c.l.b16 %v107
    %v305 = vunpack.c.l.b16 %v108
    %v306 = vunpack.c.l.b16 %v109
    %v307 = vunpack.c.l.b16 %v110
    %v308 = vunpack.c.l.b16 %v111
    %v309 = vunpack.c.l.b16 %v112
    %v310 = vunpack.c.l.b16 %v113
    %v311 = vunpack.c.l.b16 %v114
    %v312 = vunpack.c.l.b16 %v115
    %v313 = vunpack.c.l.b16 %v116
    %v314 = vunpack.c.l.b16 %v117
    %v315 = vunpack.c.l.b16 %v118
    %v316 = vunpack.c.l.b16 %v119
    %v317 = vunpack.c.l.b16 %v120
    %v318 = vunpack.c.l.b16 %v121
    %v319 = vunpack.c.l.b16 %v122
    %v320 = vunpack.c.l.b16 %v123
    %v321 = vunpack.c.l.b16 %v124
    %v322 = vunpack.c.l.b16 %v125
    %v323 = vunpack.c.l.b16 %v126
    %v324 = vunpack.c.l.b16 %v127
    %v325 = vunpack.c.l.b16 %v128
    %v326 = vunpack.c.l.b16 %v129
    %v327 = vpack.c.b16 %v232, %v231
    %v328 = vpack.c.b16 %v234, %v233
    %v329 = vpack.c.b16 %v236, %v235
    %v330 = vpack.c.b16 %v238, %v237
    %v331 = vpack.c.b16 %v240, %v239
    %v332 = vpack.c.b16 %v242, %v241
    %v333 = vpack.c.b16 %v244, %v243
    %v334 = vpack.c.b16 %v246, %v245
    %v335 = vpack.c.b16 %v248, %v247
    %v336 = vpack.c.b16 %v250, %v249
    %v337 = vpack.c.b16 %v252, %v251
    %v338 = vpack.c.b16 %v254, %v253
    %v339 = vpack.c.b16 %v256, %v255
    %v340 = vpack.c.b16 %v258, %v257
    %v341 = vpack.c.b16 %v260, %v259
    %v342 = vpack.c.b16 %v262, %v261
    %v343 = vpack.c.b16 %v264, %v263
    %v344 = vpack.c.b16 %v266, %v265
    %v345 = vpack.c.b16 %v268, %v267
    %v346 = vpack.c.b16 %v270, %v269
    %v347 = vpack.c.b16 %v272, %v271
    %v348 = vpack.c.b16 %v274, %v273
    %v349 = vpack.c.b16 %v276, %v275
    %v350 = vpack.c.b16 %v278, %v277
    %v351 = vpack.c.b16 %v280, %v279
    %v352 = vpack.c.b16 %v282, %v281
    %v353 = vpack.c.b16 %v284, %v283
    %v354 = vpack.c.b16 %v286, %v285
    %v355 = vpack.c.b16 %v288, %v287
    %v356 = vpack.c.b16 %v290, %v289
    %v357 = vpack.c.b16 %v292, %v291
    %v358 = vpack.c.b16 %v294, %v293
    %v359 = vpack.c.b16 %v296, %v295
    %v360 = vpack.c.b16 %v298, %v297
    %v361 = vpack.c.b16 %v300, %v299
    %v362 = vpack.c.b16 %v302, %v301
    %v363 = vpack.c.b16 %v304, %v303
    %v364 = vpack.c.b16 %v306, %v305
    %v365 = vpack.c.b16 %v308, %v307
    %v366 = vpack.c.b16 %v310, %v309
    %v367 = vpack.c.b16 %v312, %v311
    %v368 = vpack.c.b16 %v314, %v313
    %v369 = vpack.c.b16 %v316, %v315
    %v370 = vpack.c.b16 %v318, %v317
    %v371 = vpack.c.b16 %v320, %v319
    %v372 = vpack.c.b16 %v322, %v321
    %v373 = vpack.c.b16 %v324, %v323
    %v374 = vpack.c.b16 %v326, %v325
    %423 = vmatprep.subr.bf16.mxu0 0
    %424 = vmatpush1.bf16.msra.mxu0 %v334
    %425 = vmatprep.subr.bf16.mxu0 0
    %426 = vmatpush1.bf16.msra.mxu0 %v333
    %427 = vmatprep.subr.bf16.mxu0 0
    %428 = vmatpush1.bf16.msra.mxu0 %v332
    %429 = vmatprep.subr.bf16.mxu0 0
    %430 = vmatpush1.bf16.msra.mxu0 %v331
    %431 = vmatprep.subr.bf16.mxu0 0
    %432 = vmatpush1.bf16.msra.mxu0 %v330
    %433 = vmatprep.subr.bf16.mxu0 0
    %434 = vmatpush1.bf16.msra.mxu0 %v329
    %435 = vmatprep.subr.bf16.mxu0 0
    %436 = vmatpush1.bf16.msra.mxu0 %v328
    %437 = vmatprep.subr.bf16.mxu0 0
    %438 = vmatpush1.bf16.msra.mxu0 %v327
    %439 = vmatprep.subr.bf16.mxu0 0
    %440 = vmatpush2.bf16.msra.mxu0 %v342
    %441 = vmatprep.subr.bf16.mxu0 0
    %442 = vmatpush2.bf16.msra.mxu0 %v341
    %443 = vmatprep.subr.bf16.mxu0 0
    %444 = vmatpush2.bf16.msra.mxu0 %v340
    %445 = vmatprep.subr.bf16.mxu0 0
    %446 = vmatpush2.bf16.msra.mxu0 %v339
    %447 = vmatprep.subr.bf16.mxu0 0
    %448 = vmatpush2.bf16.msra.mxu0 %v338
    %449 = vmatprep.subr.bf16.mxu0 0
    %450 = vmatpush2.bf16.msra.mxu0 %v337
    %451 = vmatprep.subr.bf16.mxu0 0
    %452 = vmatpush2.bf16.msra.mxu0 %v336
    %453 = vmatprep.subr.bf16.mxu0 0
    %454 = vmatpush2.bf16.msra.mxu0 %v335
    %455 = vmatprep.mubr.bf16.mxu0 %v29
    %456 = vmatmul.mubr.bf16.gmra.mxu0 %v28
    %v457 = vpop.f32.mrf.mxu0
    %v458 = vadd.f32 %v134, %v457
    %v459 = vpop.f32.mrf.mxu0
    %v460 = vpop.f32.mrf.mxu0
    %v461 = vpop.f32.mrf.mxu0
    %462 = vdwg.mxu0
    %463 = vmatprep.subr.bf16.mxu0 0
    %464 = vmatpush1.bf16.msra.mxu0 %v350
    %465 = vmatprep.subr.bf16.mxu0 0
    %466 = vmatpush1.bf16.msra.mxu0 %v349
    %467 = vmatprep.subr.bf16.mxu0 0
    %468 = vmatpush1.bf16.msra.mxu0 %v348
    %469 = vmatprep.subr.bf16.mxu0 0
    %470 = vmatpush1.bf16.msra.mxu0 %v347
    %471 = vmatprep.subr.bf16.mxu0 0
    %472 = vmatpush1.bf16.msra.mxu0 %v346
    %473 = vmatprep.subr.bf16.mxu0 0
    %474 = vmatpush1.bf16.msra.mxu0 %v345
    %475 = vmatprep.subr.bf16.mxu0 0
    %476 = vmatpush1.bf16.msra.mxu0 %v344
    %477 = vmatprep.subr.bf16.mxu0 0
    %478 = vmatpush1.bf16.msra.mxu0 %v343
    %479 = vmatprep.subr.bf16.mxu0 0
    %480 = vmatpush2.bf16.msra.mxu0 %v358
    %481 = vmatprep.subr.bf16.mxu0 0
    %482 = vmatpush2.bf16.msra.mxu0 %v357
    %483 = vmatprep.subr.bf16.mxu0 0
    %484 = vmatpush2.bf16.msra.mxu0 %v356
    %485 = vmatprep.subr.bf16.mxu0 0
    %486 = vmatpush2.bf16.msra.mxu0 %v355
    %487 = vmatprep.subr.bf16.mxu0 0
    %488 = vmatpush2.bf16.msra.mxu0 %v354
    %489 = vmatprep.subr.bf16.mxu0 0
    %490 = vmatpush2.bf16.msra.mxu0 %v353
    %491 = vmatprep.subr.bf16.mxu0 0
    %492 = vmatpush2.bf16.msra.mxu0 %v352
    %493 = vmatprep.subr.bf16.mxu0 0
    %494 = vmatpush2.bf16.msra.mxu0 %v351
    %495 = vmatprep.mubr.bf16.mxu0 %v31
    %496 = vmatmul.mubr.bf16.gmra.mxu0 %v30
    %v497 = vpop.f32.mrf.mxu0
    %v498 = vadd.f32 %v458, %v497
    %v499 = vpop.f32.mrf.mxu0
    %v500 = vpop.f32.mrf.mxu0
    %v501 = vpop.f32.mrf.mxu0
    %502 = vdwg.mxu0
    %503 = vmatprep.subr.bf16.mxu0 0
    %504 = vmatpush1.bf16.msra.mxu0 %v366
    %505 = vmatprep.subr.bf16.mxu0 0
    %506 = vmatpush1.bf16.msra.mxu0 %v365
    %507 = vmatprep.subr.bf16.mxu0 0
    %508 = vmatpush1.bf16.msra.mxu0 %v364
    %509 = vmatprep.subr.bf16.mxu0 0
    %510 = vmatpush1.bf16.msra.mxu0 %v363
    %511 = vmatprep.subr.bf16.mxu0 0
    %512 = vmatpush1.bf16.msra.mxu0 %v362
    %513 = vmatprep.subr.bf16.mxu0 0
    %514 = vmatpush1.bf16.msra.mxu0 %v361
    %515 = vmatprep.subr.bf16.mxu0 0
    %516 = vmatpush1.bf16.msra.mxu0 %v360
    %517 = vmatprep.subr.bf16.mxu0 0
    %518 = vmatpush1.bf16.msra.mxu0 %v359
    %519 = vmatprep.subr.bf16.mxu0 0
    %520 = vmatpush2.bf16.msra.mxu0 %v374
    %521 = vmatprep.subr.bf16.mxu0 0
    %522 = vmatpush2.bf16.msra.mxu0 %v373
    %523 = vmatprep.subr.bf16.mxu0 0
    %524 = vmatpush2.bf16.msra.mxu0 %v372
    %525 = vmatprep.subr.bf16.mxu0 0
    %526 = vmatpush2.bf16.msra.mxu0 %v371
    %527 = vmatprep.subr.bf16.mxu0 0
    %528 = vmatpush2.bf16.msra.mxu0 %v370
    %529 = vmatprep.subr.bf16.mxu0 0
    %530 = vmatpush2.bf16.msra.mxu0 %v369
    %531 = vmatprep.subr.bf16.mxu0 0
    %532 = vmatpush2.bf16.msra.mxu0 %v368
    %533 = vmatprep.subr.bf16.mxu0 0
    %534 = vmatpush2.bf16.msra.mxu0 %v367
    %535 = vmatprep.mubr.bf16.mxu0 %v33
    %536 = vmatmul.mubr.bf16.gmra.mxu0 %v32
    %v537 = vpop.f32.mrf.mxu0
    %v538 = vadd.f32 %v498, %v537
    %v539 = vpop.f32.mrf.mxu0
    %v540 = vpop.f32.mrf.mxu0
    %v541 = vpop.f32.mrf.mxu0
    %542 = vdwg.mxu0
    %v543 = vmax.f32 %v538, 0.0
    %vm544 = vcmask 130048
    %v545 = vsel %vm544, %v543, 0.0
    %546 = vadd.xlane.f32.xlu0 %v545
    %v547 = vpop.xlane.xlu0 %546
    %v548 = vrcp.pop 16.0
    %v549 = vmul.f32 %v547, %v548
    %v550 = vsub.f32 %v543, %v549
    %v551 = vmul.f32 %v550, %v550
    %v552 = vsel %vm544, %v551, 0.0
    %553 = vadd.xlane.f32.xlu0 %v552
    %v554 = vpop.xlane.xlu0 %553
    %v555 = vmul.f32 %v554, %v548
    %v556 = vadd.f32 %v555, 1e-05
    %v557 = vrsqrt.pop %v556
    %v558 = vmul.f32 %v550, %v557
    %v559 = vlaneseq
    %v560 = vshrl.u32 %v559, 7
    %v561 = vsub.s32 1, %v560
    %v562 = vrot.slane %v130, %v561
    %v563 = vmul.f32 %v558, %v562
    %v564 = vlaneseq
    %v565 = vshrl.u32 %v564, 7
    %v566 = vsub.s32 2, %v565
    %v567 = vrot.slane %v130, %v566
    %v568 = vadd.f32 %v563, %v567
    %v569 = vpack.c.bf16 %v568, %v568
    %v570 = vld [vmem:[%s3] sm:$0xf]
    %v571 = vld [vmem:[%s3 + $0x4] sm:$0xf]
    %v572 = vld [vmem:[%s4] sm:$0x1]
    %v574 = vlaneseq
    %v575 = vshrl.u32 %v574, 7
    %v576 = vsub.s32 0, %v575
    %v577 = vrot.slane %v572, %v576
    %v581 = vunpack.c.l.b16 %v570
    %v582 = vunpack.c.l.b16 %v571
    %v583 = vpack.c.b16 %v582, %v581
    %v586 = vsel %vm544, %v569, 0
    %588 = vmatprep.subr.bf16.mxu0 0
    %589 = vmatpush1.bf16.msra.mxu0 0
    %590 = vmatprep.subr.bf16.mxu0 0
    %591 = vmatpush1.bf16.msra.mxu0 0
    %592 = vmatprep.subr.bf16.mxu0 0
    %593 = vmatpush1.bf16.msra.mxu0 0
    %594 = vmatprep.subr.bf16.mxu0 0
    %595 = vmatpush1.bf16.msra.mxu0 0
    %596 = vmatprep.subr.bf16.mxu0 0
    %597 = vmatpush1.bf16.msra.mxu0 0
    %598 = vmatprep.subr.bf16.mxu0 0
    %599 = vmatpush1.bf16.msra.mxu0 0
    %600 = vmatprep.subr.bf16.mxu0 0
    %601 = vmatpush1.bf16.msra.mxu0 0
    %602 = vmatprep.subr.bf16.mxu0 0
    %603 = vmatpush1.bf16.msra.mxu0 %v583
    %604 = vmatprep.subr.bf16.mxu0 0
    %605 = vmatpush2.bf16.msra.mxu0 0
    %606 = vmatprep.subr.bf16.mxu0 0
    %607 = vmatpush2.bf16.msra.mxu0 0
    %608 = vmatprep.subr.bf16.mxu0 0
    %609 = vmatpush2.bf16.msra.mxu0 0
    %610 = vmatprep.subr.bf16.mxu0 0
    %611 = vmatpush2.bf16.msra.mxu0 0
    %612 = vmatprep.subr.bf16.mxu0 0
    %613 = vmatpush2.bf16.msra.mxu0 0
    %614 = vmatprep.subr.bf16.mxu0 0
    %615 = vmatpush2.bf16.msra.mxu0 0
    %616 = vmatprep.subr.bf16.mxu0 0
    %617 = vmatpush2.bf16.msra.mxu0 0
    %618 = vmatprep.subr.bf16.mxu0 0
    %619 = vmatpush2.bf16.msra.mxu0 0
    %620 = vmatprep.mubr.bf16.mxu0 0
    %621 = vmatmul.mubr.bf16.gmra.mxu0 %v586
    %v622 = vpop.f32.mrf.mxu0
    %v623 = vadd.f32 %v577, %v622
    %v624 = vpop.f32.mrf.mxu0
    %v625 = vpop.f32.mrf.mxu0
    %v626 = vpop.f32.mrf.mxu0
    %627 = vdwg.mxu0
    %628 = vst [vmem:[#allocation2] sm:$0xff] %v623
    // Predicated region
    $region22: #{tpu_custom_call.1} parent=1 // pred_check
      _
    $region23: #{tpu_custom_call.1} parent=1 // pred_check_branch
      %630 = sbr.rel (0) target = $region25
    $region24: #{tpu_custom_call.1} parent=1 // pred_region
      %s632 = ssub.s32 128, 128
      %633 = vsyncadd [#allocation3], %s632
      %s635 = sshll.u32 [#allocation2], 4
      %s636 = int_to_ptr.vmem [resolvable:$true] %s635
      %638 = dma.vmem_to_hbm [thread:$0]  %s636, 128, %s5, [#allocation3]
    $region25: #{tpu_custom_call.1} parent=1 // pred_fallthru
      _
    // Predicated region
    $region26: #{tpu_custom_call.1} parent=1 // pred_check
      _
    $region27: #{tpu_custom_call.1} parent=1 // pred_check_branch
      %640 = sbr.rel (0) target = $region29
    $region28: #{tpu_custom_call.1} parent=1 // pred_region
      %641 = dma.done [#allocation3], 128
    $region29: #{tpu_custom_call.1} parent=1 // pred_fallthru
      _
    %642 = vsyncpa [#allocation3], 1

</llo_original>
